<compile_context>
chip_gen: v7x
topology: tpu7x:2x2x1
jax: 0.10.0
libtpu: 0.0.40
codegen_flags: <defaults>
</compile_context>

<pallas_src>
import functools

import jax
import jax.numpy as jnp
from jax.experimental import pallas as pl
from jax.experimental.pallas import tpu as pltpu


def _round_up(x, m):
    return ((x + m - 1) // m) * m


def _vq_kernel(x_ref, et_ref, esqh_ref, q_ref, ind_ref, sse_ref, *, n_valid):
    """One row-tile of the VQ forward.

    x_ref    : (TN, Dp)  input rows (zero-padded rows / dim columns)
    et_ref   : (Ep, Dp)  codebook transposed (n_embed, dim), zero-padded
    esqh_ref : (1, Ep)   0.5 * per-code squared norms (huge for padded codes)
    q_ref    : (TN, Dp)  quantized rows (out)
    ind_ref  : (1, TN)   chosen code index per row, lane-dense (out)
    sse_ref  : (1, 1)    per-tile sum of squared error over valid rows (out)
    """
    x = x_ref[...]                       # (TN, Dp)
    et = et_ref[...]                     # (Ep, Dp)
    esq_half = esqh_ref[...]             # (1, Ep)
    tn = x.shape[0]
    ne = et.shape[0]

    # dist' = 0.5|e|^2 - x.e   (|x|^2 dropped, *0.5 scaling: argmin-invariant)
    # Contract the dim axis of both operands (rhs-transposed matmul, MXU-native).
    xe = jax.lax.dot_general(
        x, et,
        dimension_numbers=(((1,), (1,)), ((), ())),
        preferred_element_type=jnp.float32)                      # (TN, Ep)
    dist = esq_half - xe

    # argmin over the codebook axis (first-occurrence tie-break, like torch).
    iota = jax.lax.broadcasted_iota(jnp.int32, dist.shape, 1)    # (TN, Ep)
    min_val = jnp.min(dist, axis=1, keepdims=True)               # (TN, 1)
    ind_col = jnp.min(jnp.where(dist == min_val, iota, ne),
                      axis=1, keepdims=True)                     # (TN, 1) int32

    # Lane-dense index output: (TN,1) column -> (1,TN) row (cheap XLU transpose).
    ind_ref[...] = jnp.transpose(ind_col, (1, 0))

    # Gather the selected code vectors via a one-hot matmul on the MXU.
    onehot = (iota == ind_col).astype(x.dtype)                   # (TN, Ep)
    q = jnp.dot(onehot, et, preferred_element_type=jnp.float32)  # (TN, Dp)
    q_ref[...] = q.astype(q_ref.dtype)

    # Per-tile SSE over valid (non-padded) rows only; reduced in the wrapper.
    row = (pl.program_id(0) * tn
           + jax.lax.broadcasted_iota(jnp.int32, (tn, 1), 0))    # (TN, 1)
    err = jnp.sum((q - x.astype(jnp.float32)) ** 2, axis=1, keepdims=True)
    err = jnp.where(row < n_valid, err, 0.0)
    sse_ref[...] = jnp.sum(err, axis=0, keepdims=True)           # (1, 1)


@functools.partial(jax.jit, static_argnames=("tn",))
def quantize_forward(x, embed, *, tn=512):
    """x: (B, H, W, dim) f32, embed: (dim, n_embed) f32. tn: row tile (sweep 512-2048)."""
    B, H, W, dim = x.shape
    n_embed = embed.shape[1]
    N = B * H * W

    # Clamp the row tile so small inputs don't pay for padded-row compute;
    # keep it a multiple of 8 (sublane) — multiples of 128 keep the index
    # output fully lane-dense.
    tn_eff = _round_up(min(tn, _round_up(N, 128)), 8)

    n_pad = _round_up(N, tn_eff)        # pad rows so any N works with any tn
    d_pad = _round_up(dim, 128)         # lane-align q / x blocks
    e_pad = _round_up(n_embed, 128)     # lane-align the codebook axis
    num_tiles = n_pad // tn_eff

    flat = x.reshape(N, dim)
    if (n_pad, d_pad) != (N, dim):
        flat = jnp.pad(flat, ((0, n_pad - N), (0, d_pad - dim)))
    # Single codebook orientation: (n_embed, dim), zero-padded.
    embed_t = embed.T
    if (e_pad, d_pad) != (n_embed, dim):
        embed_t = jnp.pad(embed_t, ((0, e_pad - n_embed), (0, d_pad - dim)))
    # Hoisted 0.5 * per-code squared norms; padded codes get a huge norm so
    # the argmin never selects them.
    e_sq_half = 0.5 * jnp.sum(embed.astype(jnp.float32) ** 2, axis=0)
    e_sq_half = jnp.pad(e_sq_half, (0, e_pad - n_embed), constant_values=1e30)
    e_sq_half = e_sq_half.reshape(1, e_pad)

    kernel = functools.partial(_vq_kernel, n_valid=N)

    q_flat, ind_rows, sse_tiles = pl.pallas_call(
        kernel,
        out_shape=(
            jax.ShapeDtypeStruct((n_pad, d_pad), x.dtype),
            jax.ShapeDtypeStruct((num_tiles, tn_eff), jnp.int32),
            jax.ShapeDtypeStruct((num_tiles, 1), jnp.float32),
        ),
        grid_spec=pltpu.PrefetchScalarGridSpec(
            num_scalar_prefetch=0,
            grid=(num_tiles,),
            in_specs=[
                pl.BlockSpec((tn_eff, d_pad), lambda i: (i, 0)),
                pl.BlockSpec((e_pad, d_pad), lambda i: (0, 0)),
                pl.BlockSpec((1, e_pad), lambda i: (0, 0)),
            ],
            out_specs=[
                pl.BlockSpec((tn_eff, d_pad), lambda i: (i, 0)),
                pl.BlockSpec((1, tn_eff), lambda i: (i, 0)),
                pl.BlockSpec((1, 1), lambda i: (i, 0)),
            ],
        ),
        compiler_params=pltpu.CompilerParams(
            # No cross-tile state (per-tile sse partials) -> grid can be
            # sharded across TensorCores (v7x megacore).
            dimension_semantics=("parallel",),
        ),
    )(flat, embed_t, e_sq_half)

    quantize = q_flat[:N, :dim].reshape(B, H, W, dim)
    embed_ind = ind_rows.reshape(n_pad)[:N].reshape(B, H, W)
    diff = jnp.sum(sse_tiles) / jnp.float32(N * dim)  # mean over all elements
    # straight-through estimator: numerically equal to `quantize`
    quantize_st = x + jax.lax.stop_gradient(quantize - x)
    return quantize_st, diff, embed_ind


def _reference(x, embed):
    """Pure-JAX reference mirroring the PyTorch forward (eval mode)."""
    B, H, W, dim = x.shape
    flat = x.reshape(-1, dim)
    dist = (jnp.sum(flat ** 2, axis=1, keepdims=True)
            - 2.0 * flat @ embed
            + jnp.sum(embed ** 2, axis=0, keepdims=True))
    ind = jnp.argmin(dist, axis=1)
    q = embed.T[ind].reshape(B, H, W, dim)
    diff = jnp.mean((q - x) ** 2)
    return q, diff, ind.reshape(B, H, W)


if __name__ == "__main__":
    key = jax.random.PRNGKey(0)

    configs = [
        # (B, H, W, dim, n_embed, tn)
        (2, 8, 8, 32, 64, 256),     # N=128 -> single 128-row tile after clamping
        (2, 12, 12, 48, 200, 128),  # N=288 -> 3 tiles; dim and n_embed both padded
        (2, 16, 16, 64, 512, 512),  # N=512 -> single tile; typical VQ-VAE codebook
    ]

    for (B, H, W, dim, n_embed, tn) in configs:
        kx, ke, key = jax.random.split(key, 3)
        x = jax.random.normal(kx, (B, H, W, dim), dtype=jnp.float32)
        embed = jax.random.normal(ke, (dim, n_embed), dtype=jnp.float32)

        q, diff, ind = quantize_forward(x, embed, tn=tn)
        jax.block_until_ready((q, diff, ind))

        q_ref, diff_ref, ind_ref = _reference(x, embed)

        # Robust checks (float reassociation may legitimately flip an argmin on
        # exact/near ties, so require (near-)optimality + very high exact match).
        flat = x.reshape(-1, dim)
        dist = (jnp.sum(flat ** 2, axis=1, keepdims=True)
                - 2.0 * flat @ embed
                + jnp.sum(embed ** 2, axis=0, keepdims=True))
        ind_flat = ind.reshape(-1)
        d_chosen = jnp.take_along_axis(dist, ind_flat[:, None], axis=1)[:, 0]
        d_best = jnp.min(dist, axis=1)

        assert bool(jnp.all((ind_flat >= 0) & (ind_flat < n_embed)))
        assert bool(jnp.all(d_chosen <= d_best + 1e-3))
        assert float(jnp.mean((ind_flat == ind_ref.reshape(-1)).astype(jnp.float32))) >= 0.99

        # quantize equals the selected code vectors (straight-through value)
        q_sel = embed.T[ind_flat].reshape(x.shape)
        assert jnp.allclose(q, q_sel, atol=1e-4, rtol=1e-4)
        # diff equals the MSE of the kernel's own selection, and matches reference
        assert jnp.allclose(diff, jnp.mean((q_sel - x) ** 2), atol=1e-4, rtol=1e-4)
        assert jnp.allclose(diff, diff_ref, atol=1e-3, rtol=1e-3)

    print("KERNEL_OK")
</pallas_src>

<mosaic_0001>
module attributes {stable_mosaic.version = 11 : i64} {
  func.func @_vq_kernel(%arg0: i32, %arg1: memref<128x128xf32, #tpu.memory_space<vmem>>, %arg2: memref<128x128xf32, #tpu.memory_space<vmem>>, %arg3: memref<1x128xf32, #tpu.memory_space<vmem>>, %arg4: memref<128x128xf32, #tpu.memory_space<vmem>>, %arg5: memref<1x128xi32, #tpu.memory_space<vmem>>, %arg6: memref<1x1xf32, #tpu.memory_space<vmem>>) attributes {dimension_semantics = [#tpu.dimension_semantics<parallel>], iteration_bounds = array<i64: 1>, scalar_prefetch = 0 : i64, scratch_operands = 0 : i64, tpu.core_type = #tpu.core_type<tc>, window_params = [{transform_indices = @transform_0, window_bounds = array<i64: 128, 128>}, {pipeline_mode = #tpu.pipeline_mode<synchronous>, transform_indices = @transform_1, window_bounds = array<i64: 128, 128>}, {pipeline_mode = #tpu.pipeline_mode<synchronous>, transform_indices = @transform_2, window_bounds = array<i64: 1, 128>}, {transform_indices = @transform_3, window_bounds = array<i64: 128, 128>}, {transform_indices = @transform_4, window_bounds = array<i64: 1, 128>}, {transform_indices = @transform_5, window_bounds = array<i64: 1, 1>}]} {
    %c0 = arith.constant 0 : index
    %c0_0 = arith.constant 0 : index
    %0 = vector.load %arg1[%c0, %c0_0] : memref<128x128xf32, #tpu.memory_space<vmem>>, vector<128x128xf32>
    %c0_1 = arith.constant 0 : index
    %c0_2 = arith.constant 0 : index
    %1 = vector.load %arg2[%c0_1, %c0_2] : memref<128x128xf32, #tpu.memory_space<vmem>>, vector<128x128xf32>
    %c0_3 = arith.constant 0 : index
    %c0_4 = arith.constant 0 : index
    %2 = vector.load %arg3[%c0_3, %c0_4] : memref<1x128xf32, #tpu.memory_space<vmem>>, vector<1x128xf32>
    %cst = arith.constant dense<0.000000e+00> : vector<128x128xf32>
    %3 = tpu.matmul %0, %1, %cst {dimension_numbers = #tpu.dot_dimension_numbers<[1], [1], [0], [0], [0, 0, 1, 0], [], []>} : vector<128x128xf32>, vector<128x128xf32>, vector<128x128xf32> -> vector<128x128xf32>
    %4 = vector.broadcast %2 : vector<1x128xf32> to vector<128x128xf32>
    %5 = arith.subf %4, %3 : vector<128x128xf32>
    %6 = tpu.iota {dimensions = array<i32: 1>} : vector<128x128xi32>
    %cst_5 = arith.constant dense<0x7F800000> : vector<128xf32>
    %7 = vector.multi_reduction <minimumf>, %5, %cst_5 [1] : vector<128x128xf32> to vector<128xf32>
    %8 = vector.shape_cast %7 : vector<128xf32> to vector<128x1xf32>
    %9 = vector.broadcast %8 : vector<128x1xf32> to vector<128x128xf32>
    %10 = arith.cmpf oeq, %5, %9 : vector<128x128xf32>
    %c128_i32 = arith.constant 128 : i32
    %11 = vector.broadcast %c128_i32 : i32 to vector<128x128xi32>
    %12 = arith.select %10, %6, %11 : vector<128x128xi1>, vector<128x128xi32>
    %cst_6 = arith.constant dense<2147483647> : vector<128xi32>
    %13 = vector.multi_reduction <minsi>, %12, %cst_6 [1] : vector<128x128xi32> to vector<128xi32>
    %14 = vector.shape_cast %13 : vector<128xi32> to vector<128x1xi32>
    %15 = tpu.transpose %14, [1, 0] : vector<128x1xi32> -> vector<1x128xi32>
    %c0_7 = arith.constant 0 : index
    %c0_8 = arith.constant 0 : index
    %16 = vector.load %arg5[%c0_7, %c0_8] : memref<1x128xi32, #tpu.memory_space<vmem>>, vector<1x128xi32>
    tpu.vector_store %arg5[%c0_7, %c0_8], %15 {strides = array<i32>} : memref<1x128xi32, #tpu.memory_space<vmem>>, vector<1x128xi32>,
    %17 = vector.broadcast %14 : vector<128x1xi32> to vector<128x128xi32>
    %18 = arith.cmpi eq, %6, %17 : vector<128x128xi32>
    %19 = arith.extui %18 : vector<128x128xi1> to vector<128x128xi32>
    %20 = arith.sitofp %19 : vector<128x128xi32> to vector<128x128xf32>
    %cst_9 = arith.constant dense<0.000000e+00> : vector<128x128xf32>
    %21 = tpu.matmul %20, %1, %cst_9 {dimension_numbers = #tpu.dot_dimension_numbers<[1], [0], [0], [1], [0, 0, 1, 1], [], []>} : vector<128x128xf32>, vector<128x128xf32>, vector<128x128xf32> -> vector<128x128xf32>
    %c0_10 = arith.constant 0 : index
    %c0_11 = arith.constant 0 : index
    %22 = vector.load %arg4[%c0_10, %c0_11] : memref<128x128xf32, #tpu.memory_space<vmem>>, vector<128x128xf32>
    tpu.vector_store %arg4[%c0_10, %c0_11], %21 {strides = array<i32>} : memref<128x128xf32, #tpu.memory_space<vmem>>, vector<128x128xf32>,
    %c128_i32_12 = arith.constant 128 : i32
    %23 = arith.muli %arg0, %c128_i32_12 : i32
    %24 = tpu.iota {dimensions = array<i32: 0>} : vector<128x1xi32>
    %25 = vector.broadcast %23 : i32 to vector<128x1xi32>
    %26 = arith.addi %25, %24 : vector<128x1xi32>
    %27 = arith.subf %21, %0 : vector<128x128xf32>
    %28 = arith.mulf %27, %27 : vector<128x128xf32>
    %cst_13 = arith.constant dense<0.000000e+00> : vector<128xf32>
    %29 = vector.multi_reduction <add>, %28, %cst_13 [1] : vector<128x128xf32> to vector<128xf32>
    %30 = vector.shape_cast %29 : vector<128xf32> to vector<128x1xf32>
    %c128_i32_14 = arith.constant 128 : i32
    %31 = vector.broadcast %c128_i32_14 : i32 to vector<128x1xi32>
    %32 = arith.cmpi slt, %26, %31 : vector<128x1xi32>
    %cst_15 = arith.constant 0.000000e+00 : f32
    %33 = vector.broadcast %cst_15 : f32 to vector<128x1xf32>
    %34 = arith.select %32, %30, %33 : vector<128x1xi1>, vector<128x1xf32>
    %cst_16 = arith.constant dense<0.000000e+00> : vector<1xf32>
    %35 = vector.multi_reduction <add>, %34, %cst_16 [0] : vector<128x1xf32> to vector<1xf32>
    %36 = vector.shape_cast %35 : vector<1xf32> to vector<1x1xf32>
    %c0_17 = arith.constant 0 : index
    %c0_18 = arith.constant 0 : index
    %37 = vector.load %arg6[%c0_17, %c0_18] : memref<1x1xf32, #tpu.memory_space<vmem>>, vector<1x1xf32>
    tpu.vector_store %arg6[%c0_17, %c0_18], %36 {strides = array<i32>} : memref<1x1xf32, #tpu.memory_space<vmem>>, vector<1x1xf32>,
    return
  }
  func.func @transform_0(%arg0: i32) -> (i32, i32) {
    %c0_i32 = arith.constant 0 : i32
    %c0_i32_0 = arith.constant 0 : i32
    return %arg0, %c0_i32 : i32, i32
  }
  func.func @transform_1(%arg0: i32) -> (i32, i32) {
    %c0_i32 = arith.constant 0 : i32
    %c0_i32_0 = arith.constant 0 : i32
    %c0_i32_1 = arith.constant 0 : i32
    return %c0_i32, %c0_i32_0 : i32, i32
  }
  func.func @transform_2(%arg0: i32) -> (i32, i32) {
    %c0_i32 = arith.constant 0 : i32
    %c0_i32_0 = arith.constant 0 : i32
    %c0_i32_1 = arith.constant 0 : i32
    return %c0_i32, %c0_i32_0 : i32, i32
  }
  func.func @transform_3(%arg0: i32) -> (i32, i32) {
    %c0_i32 = arith.constant 0 : i32
    %c0_i32_0 = arith.constant 0 : i32
    return %arg0, %c0_i32 : i32, i32
  }
  func.func @transform_4(%arg0: i32) -> (i32, i32) {
    %c0_i32 = arith.constant 0 : i32
    %c0_i32_0 = arith.constant 0 : i32
    return %arg0, %c0_i32 : i32, i32
  }
  func.func @transform_5(%arg0: i32) -> (i32, i32) {
    %c0_i32 = arith.constant 0 : i32
    %c0_i32_0 = arith.constant 0 : i32
    return %arg0, %c0_i32 : i32, i32
  }
}

</mosaic_0001>

<llo_original>
// kernel: quantize_forward.1
$region0: #{quantize_forward.1}
  #allocation0 [shape = 'u32[]', space=smem, size = 0x4, offset = 0x4, fixed_abs, tag = 'smem constant byte address 0x4 - core index']
  #allocation1 [shape = 'u32[144,128]{1,0:T(1,128)}', space=vmem, size = 0x12000, scoped, tag = 'internal scratch']
  %s0 = inlined_call_operand.vmem [shape: f32[128,128], index: 0, kind: input, shape index: {}]
  %s1 = inlined_call_operand.vmem [shape: f32[128,128], index: 1, kind: input, shape index: {}]
  %s2 = inlined_call_operand.vmem [shape: f32[1,128], index: 2, kind: input, shape index: {}]
  %s3 = inlined_call_operand.vmem [shape: f32[128,128], index: 3, kind: output, shape index: {0}]
  %s4 = inlined_call_operand.vmem [shape: s32[1,128], index: 4, kind: output, shape index: {1}]
  %s5 = inlined_call_operand.hbm [shape: f32[1,1], index: 5, kind: output, shape index: {2}]
  %6 = xla_tuple %s3, %s4, %s5
  %s7 = sld [smem:[#allocation0]]
  $region38: #{quantize_forward.1} parent=0
    _
  %s9 = ssub.s32 1, %s7
  %s10 = scalar_select 0, %s9, %s7
  $region1: #{quantize_forward.1} parent=0
    #allocation2 [shape = 'u8[512]{0}', space=vmem, size = 0x400, scoped, tag = 'output window, operand 2, single buffered']
    #allocation3 [shape = 's32[1]{0}', space=sflag, size = 0x4, scoped, tag = 'scoped memory for quantize_forward.1']
    %11 = vsyncpa [#allocation3], 0
    // Predicated region
    $region2: #{quantize_forward.1} parent=1 // pred_check
      _
    $region3: #{quantize_forward.1} parent=1 // pred_check_branch
      %13 = sbr.rel (0) target = $region5
    $region4: #{quantize_forward.1} parent=1 // pred_region
      _
    $region5: #{quantize_forward.1} parent=1 // pred_fallthru
      _
    // Predicated region
    $region6: #{quantize_forward.1} parent=1 // pred_check
      _
    $region7: #{quantize_forward.1} parent=1 // pred_check_branch
      %15 = sbr.rel (0) target = $region9
    $region8: #{quantize_forward.1} parent=1 // pred_region
      _
    $region9: #{quantize_forward.1} parent=1 // pred_fallthru
      _
    // Predicated region
    $region10: #{quantize_forward.1} parent=1 // pred_check
      _
    $region11: #{quantize_forward.1} parent=1 // pred_check_branch
      %17 = sbr.rel (0) target = $region13
    $region12: #{quantize_forward.1} parent=1 // pred_region
      _
    $region13: #{quantize_forward.1} parent=1 // pred_fallthru
      _
    %v18 = vld [vmem:[%s0] sm:$0xff]
    %v19 = vld [vmem:[%s0 + $0x8] sm:$0xff]
    %v20 = vld [vmem:[%s0 + $0x10] sm:$0xff]
    %v21 = vld [vmem:[%s0 + $0x18] sm:$0xff]
    %v22 = vld [vmem:[%s0 + $0x20] sm:$0xff]
    %v23 = vld [vmem:[%s0 + $0x28] sm:$0xff]
    %v24 = vld [vmem:[%s0 + $0x30] sm:$0xff]
    %v25 = vld [vmem:[%s0 + $0x38] sm:$0xff]
    %v26 = vld [vmem:[%s0 + $0x40] sm:$0xff]
    %v27 = vld [vmem:[%s0 + $0x48] sm:$0xff]
    %v28 = vld [vmem:[%s0 + $0x50] sm:$0xff]
    %v29 = vld [vmem:[%s0 + $0x58] sm:$0xff]
    %v30 = vld [vmem:[%s0 + $0x60] sm:$0xff]
    %v31 = vld [vmem:[%s0 + $0x68] sm:$0xff]
    %v32 = vld [vmem:[%s0 + $0x70] sm:$0xff]
    %v33 = vld [vmem:[%s0 + $0x78] sm:$0xff]
    %v34 = vld [vmem:[%s1] sm:$0xff]
    %v35 = vld [vmem:[%s1 + $0x8] sm:$0xff]
    %v36 = vld [vmem:[%s1 + $0x10] sm:$0xff]
    %v37 = vld [vmem:[%s1 + $0x18] sm:$0xff]
    %v38 = vld [vmem:[%s1 + $0x20] sm:$0xff]
    %v39 = vld [vmem:[%s1 + $0x28] sm:$0xff]
    %v40 = vld [vmem:[%s1 + $0x30] sm:$0xff]
    %v41 = vld [vmem:[%s1 + $0x38] sm:$0xff]
    %v42 = vld [vmem:[%s1 + $0x40] sm:$0xff]
    %v43 = vld [vmem:[%s1 + $0x48] sm:$0xff]
    %v44 = vld [vmem:[%s1 + $0x50] sm:$0xff]
    %v45 = vld [vmem:[%s1 + $0x58] sm:$0xff]
    %v46 = vld [vmem:[%s1 + $0x60] sm:$0xff]
    %v47 = vld [vmem:[%s1 + $0x68] sm:$0xff]
    %v48 = vld [vmem:[%s1 + $0x70] sm:$0xff]
    %v49 = vld [vmem:[%s1 + $0x78] sm:$0xff]
    %v50 = vld [vmem:[%s2] sm:$0x1]
    %51 = vmatprep.subr.mxu0 0.0
    %52 = vmatpush1.xpose.msra.mxu0 %v34
    %53 = vmatprep.subr.mxu0 0.0
    %54 = vmatpush1.xpose.msra.mxu0 %v35
    %55 = vmatprep.subr.mxu0 0.0
    %56 = vmatpush1.xpose.msra.mxu0 %v36
    %57 = vmatprep.subr.mxu0 0.0
    %58 = vmatpush1.xpose.msra.mxu0 %v37
    %59 = vmatprep.subr.mxu0 0.0
    %60 = vmatpush1.xpose.msra.mxu0 %v38
    %61 = vmatprep.subr.mxu0 0.0
    %62 = vmatpush1.xpose.msra.mxu0 %v39
    %63 = vmatprep.subr.mxu0 0.0
    %64 = vmatpush1.xpose.msra.mxu0 %v40
    %65 = vmatprep.subr.mxu0 0.0
    %66 = vmatpush1.xpose.msra.mxu0 %v41
    %67 = vmatprep.subr.mxu0 0.0
    %68 = vmatpush1.xpose.msra.mxu0 %v42
    %69 = vmatprep.subr.mxu0 0.0
    %70 = vmatpush1.xpose.msra.mxu0 %v43
    %71 = vmatprep.subr.mxu0 0.0
    %72 = vmatpush1.xpose.msra.mxu0 %v44
    %73 = vmatprep.subr.mxu0 0.0
    %74 = vmatpush1.xpose.msra.mxu0 %v45
    %75 = vmatprep.subr.mxu0 0.0
    %76 = vmatpush1.xpose.msra.mxu0 %v46
    %77 = vmatprep.subr.mxu0 0.0
    %78 = vmatpush1.xpose.msra.mxu0 %v47
    %79 = vmatprep.subr.mxu0 0.0
    %80 = vmatpush1.xpose.msra.mxu0 %v48
    %81 = vmatprep.subr.mxu0 0.0
    %82 = vmatpush1.xpose.msra.mxu0 %v49
    %83 = vmatprep.subr.mxu0 0.0
    %84 = vmatpush1.xpose.msra.mxu0 0.0
    %85 = vmatprep.subr.mxu0 0.0
    %86 = vmatpush1.xpose.msra.mxu0 0.0
    %87 = vmatprep.subr.mxu0 0.0
    %88 = vmatpush1.xpose.msra.mxu0 0.0
    %89 = vmatprep.subr.mxu0 0.0
    %90 = vmatpush1.xpose.msra.mxu0 0.0
    %91 = vmatprep.subr.mxu0 0.0
    %92 = vmatpush1.xpose.msra.mxu0 0.0
    %93 = vmatprep.subr.mxu0 0.0
    %94 = vmatpush1.xpose.msra.mxu0 0.0
    %95 = vmatprep.subr.mxu0 0.0
    %96 = vmatpush1.xpose.msra.mxu0 0.0
    %97 = vmatprep.subr.mxu0 0.0
    %98 = vmatpush1.xpose.msra.mxu0 0.0
    %99 = vmatprep.subr.mxu0 0.0
    %100 = vmatpush1.xpose.msra.mxu0 0.0
    %101 = vmatprep.subr.mxu0 0.0
    %102 = vmatpush1.xpose.msra.mxu0 0.0
    %103 = vmatprep.subr.mxu0 0.0
    %104 = vmatpush1.xpose.msra.mxu0 0.0
    %105 = vmatprep.subr.mxu0 0.0
    %106 = vmatpush1.xpose.msra.mxu0 0.0
    %107 = vmatprep.subr.mxu0 0.0
    %108 = vmatpush1.xpose.msra.mxu0 0.0
    %109 = vmatprep.subr.mxu0 0.0
    %110 = vmatpush1.xpose.msra.mxu0 0.0
    %111 = vmatprep.subr.mxu0 0.0
    %112 = vmatpush1.xpose.msra.mxu0 0.0
    %113 = vmatprep.subr.mxu0 0.0
    %114 = vmatpush1.xpose.msra.mxu0 0.0
    %115 = vmatprep.mubr.f32.mxu0 0.0
    %116 = vmatmul.mubr.f32.gmra.mrb[0].mxu0 %v18
    %v117 = vpop.f32.mrb[0].mxu0
    %v118 = vadd.f32 0.0, %v117
    %v119 = vpop.f32.mrb[0].mxu0
    %120 = vmatprep.mubr.f32.mxu0 0.0
    %121 = vmatmul.mubr.f32.gmra.mrb[0].mxu0 %v19
    %v122 = vpop.f32.mrb[0].mxu0
    %v123 = vadd.f32 0.0, %v122
    %v124 = vpop.f32.mrb[0].mxu0
    %125 = vmatprep.mubr.f32.mxu0 0.0
    %126 = vmatmul.mubr.f32.gmra.mrb[0].mxu0 %v20
    %v127 = vpop.f32.mrb[0].mxu0
    %v128 = vadd.f32 0.0, %v127
    %v129 = vpop.f32.mrb[0].mxu0
    %130 = vmatprep.mubr.f32.mxu0 0.0
    %131 = vmatmul.mubr.f32.gmra.mrb[0].mxu0 %v21
    %v132 = vpop.f32.mrb[0].mxu0
    %v133 = vadd.f32 0.0, %v132
    %v134 = vpop.f32.mrb[0].mxu0
    %135 = vmatprep.mubr.f32.mxu0 0.0
    %136 = vmatmul.mubr.f32.gmra.mrb[0].mxu0 %v22
    %v137 = vpop.f32.mrb[0].mxu0
    %v138 = vadd.f32 0.0, %v137
    %v139 = vpop.f32.mrb[0].mxu0
    %140 = vmatprep.mubr.f32.mxu0 0.0
    %141 = vmatmul.mubr.f32.gmra.mrb[0].mxu0 %v23
    %v142 = vpop.f32.mrb[0].mxu0
    %v143 = vadd.f32 0.0, %v142
    %v144 = vpop.f32.mrb[0].mxu0
    %145 = vmatprep.mubr.f32.mxu0 0.0
    %146 = vmatmul.mubr.f32.gmra.mrb[0].mxu0 %v24
    %v147 = vpop.f32.mrb[0].mxu0
    %v148 = vadd.f32 0.0, %v147
    %v149 = vpop.f32.mrb[0].mxu0
    %150 = vmatprep.mubr.f32.mxu0 0.0
    %151 = vmatmul.mubr.f32.gmra.mrb[0].mxu0 %v25
    %v152 = vpop.f32.mrb[0].mxu0
    %v153 = vadd.f32 0.0, %v152
    %v154 = vpop.f32.mrb[0].mxu0
    %155 = vmatprep.mubr.f32.mxu0 0.0
    %156 = vmatmul.mubr.f32.gmra.mrb[0].mxu0 %v26
    %v157 = vpop.f32.mrb[0].mxu0
    %v158 = vadd.f32 0.0, %v157
    %v159 = vpop.f32.mrb[0].mxu0
    %160 = vmatprep.mubr.f32.mxu0 0.0
    %161 = vmatmul.mubr.f32.gmra.mrb[0].mxu0 %v27
    %v162 = vpop.f32.mrb[0].mxu0
    %v163 = vadd.f32 0.0, %v162
    %v164 = vpop.f32.mrb[0].mxu0
    %165 = vmatprep.mubr.f32.mxu0 0.0
    %166 = vmatmul.mubr.f32.gmra.mrb[0].mxu0 %v28
    %v167 = vpop.f32.mrb[0].mxu0
    %v168 = vadd.f32 0.0, %v167
    %v169 = vpop.f32.mrb[0].mxu0
    %170 = vmatprep.mubr.f32.mxu0 0.0
    %171 = vmatmul.mubr.f32.gmra.mrb[0].mxu0 %v29
    %v172 = vpop.f32.mrb[0].mxu0
    %v173 = vadd.f32 0.0, %v172
    %v174 = vpop.f32.mrb[0].mxu0
    %175 = vmatprep.mubr.f32.mxu0 0.0
    %176 = vmatmul.mubr.f32.gmra.mrb[0].mxu0 %v30
    %v177 = vpop.f32.mrb[0].mxu0
    %v178 = vadd.f32 0.0, %v177
    %v179 = vpop.f32.mrb[0].mxu0
    %180 = vmatprep.mubr.f32.mxu0 0.0
    %181 = vmatmul.mubr.f32.gmra.mrb[0].mxu0 %v31
    %v182 = vpop.f32.mrb[0].mxu0
    %v183 = vadd.f32 0.0, %v182
    %v184 = vpop.f32.mrb[0].mxu0
    %185 = vmatprep.mubr.f32.mxu0 0.0
    %186 = vmatmul.mubr.f32.gmra.mrb[0].mxu0 %v32
    %v187 = vpop.f32.mrb[0].mxu0
    %v188 = vadd.f32 0.0, %v187
    %v189 = vpop.f32.mrb[0].mxu0
    %190 = vmatprep.mubr.f32.mxu0 0.0
    %191 = vmatmul.mubr.f32.gmra.mrb[0].mxu0 %v33
    %v192 = vpop.f32.mrb[0].mxu0
    %v193 = vadd.f32 0.0, %v192
    %v194 = vpop.f32.mrb[0].mxu0
    %195 = vdwg.mxu0
    %v197 = vlaneseq
    %v198 = vshrl.u32 %v197, 7
    %v199 = vsub.s32 0, %v198
    %v200 = vrot.slane %v50, %v199
    %v202 = vsub.f32 %v200, %v118
    %v203 = vsub.f32 %v200, %v123
    %v204 = vsub.f32 %v200, %v128
    %v205 = vsub.f32 %v200, %v133
    %v206 = vsub.f32 %v200, %v138
    %v207 = vsub.f32 %v200, %v143
    %v208 = vsub.f32 %v200, %v148
    %v209 = vsub.f32 %v200, %v153
    %v210 = vsub.f32 %v200, %v158
    %v211 = vsub.f32 %v200, %v163
    %v212 = vsub.f32 %v200, %v168
    %v213 = vsub.f32 %v200, %v173
    %v214 = vsub.f32 %v200, %v178
    %v215 = vsub.f32 %v200, %v183
    %v216 = vsub.f32 %v200, %v188
    %v217 = vsub.f32 %v200, %v193
    %v218 = vlaneseq
    %v219 = vand.u32 %v218, 127
    %220 = vmin.xlane.f32.xlu0 %v202
    %v221 = vpop.xlane.xlu0 %220
    %222 = vmin.xlane.f32.xlu0 %v203
    %v223 = vpop.xlane.xlu0 %222
    %224 = vmin.xlane.f32.xlu0 %v204
    %v225 = vpop.xlane.xlu0 %224
    %226 = vmin.xlane.f32.xlu0 %v205
    %v227 = vpop.xlane.xlu0 %226
    %228 = vmin.xlane.f32.xlu0 %v206
    %v229 = vpop.xlane.xlu0 %228
    %230 = vmin.xlane.f32.xlu0 %v207
    %v231 = vpop.xlane.xlu0 %230
    %232 = vmin.xlane.f32.xlu0 %v208
    %v233 = vpop.xlane.xlu0 %232
    %234 = vmin.xlane.f32.xlu0 %v209
    %v235 = vpop.xlane.xlu0 %234
    %236 = vmin.xlane.f32.xlu0 %v210
    %v237 = vpop.xlane.xlu0 %236
    %238 = vmin.xlane.f32.xlu0 %v211
    %v239 = vpop.xlane.xlu0 %238
    %240 = vmin.xlane.f32.xlu0 %v212
    %v241 = vpop.xlane.xlu0 %240
    %242 = vmin.xlane.f32.xlu0 %v213
    %v243 = vpop.xlane.xlu0 %242
    %244 = vmin.xlane.f32.xlu0 %v214
    %v245 = vpop.xlane.xlu0 %244
    %246 = vmin.xlane.f32.xlu0 %v215
    %v247 = vpop.xlane.xlu0 %246
    %248 = vmin.xlane.f32.xlu0 %v216
    %v249 = vpop.xlane.xlu0 %248
    %250 = vmin.xlane.f32.xlu0 %v217
    %v251 = vpop.xlane.xlu0 %250
    %vm252 = vcmp.eq.f32.partialorder %v202, %v221
    %vm253 = vcmp.eq.f32.partialorder %v203, %v223
    %vm254 = vcmp.eq.f32.partialorder %v204, %v225
    %vm255 = vcmp.eq.f32.partialorder %v205, %v227
    %vm256 = vcmp.eq.f32.partialorder %v206, %v229
    %vm257 = vcmp.eq.f32.partialorder %v207, %v231
    %vm258 = vcmp.eq.f32.partialorder %v208, %v233
    %vm259 = vcmp.eq.f32.partialorder %v209, %v235
    %vm260 = vcmp.eq.f32.partialorder %v210, %v237
    %vm261 = vcmp.eq.f32.partialorder %v211, %v239
    %vm262 = vcmp.eq.f32.partialorder %v212, %v241
    %vm263 = vcmp.eq.f32.partialorder %v213, %v243
    %vm264 = vcmp.eq.f32.partialorder %v214, %v245
    %vm265 = vcmp.eq.f32.partialorder %v215, %v247
    %vm266 = vcmp.eq.f32.partialorder %v216, %v249
    %vm267 = vcmp.eq.f32.partialorder %v217, %v251
    %v268 = vsel %vm252, %v219, 128
    %v269 = vsel %vm253, %v219, 128
    %v270 = vsel %vm254, %v219, 128
    %v271 = vsel %vm255, %v219, 128
    %v272 = vsel %vm256, %v219, 128
    %v273 = vsel %vm257, %v219, 128
    %v274 = vsel %vm258, %v219, 128
    %v275 = vsel %vm259, %v219, 128
    %v276 = vsel %vm260, %v219, 128
    %v277 = vsel %vm261, %v219, 128
    %v278 = vsel %vm262, %v219, 128
    %v279 = vsel %vm263, %v219, 128
    %v280 = vsel %vm264, %v219, 128
    %v281 = vsel %vm265, %v219, 128
    %v282 = vsel %vm266, %v219, 128
    %v283 = vsel %vm267, %v219, 128
    %v284 = vand.u32 %v268, 65535
    %v285 = vshra.s32 %v268, 16
    %v286 = vcvt.s32.f32 %v284
    %v287 = vcvt.s32.f32 %v285
    %288 = vmin.xlane.f32.xlu0 %v287
    %v289 = vpop.xlane.xlu0 %288
    %vm290 = vcmp.eq.f32.partialorder %v287, %v289
    %v291 = vsel %vm290, %v286, inf
    %292 = vmin.xlane.f32.xlu0 %v291
    %v293 = vpop.xlane.xlu0 %292
    %v294 = vcvt.f32.s32 %v293
    %v295 = vcvt.f32.s32 %v289
    %v296 = vshll.u32 %v295, 16
    %v297 = vadd.s32 %v296, %v294
    %v298 = vand.u32 %v269, 65535
    %v299 = vshra.s32 %v269, 16
    %v300 = vcvt.s32.f32 %v298
    %v301 = vcvt.s32.f32 %v299
    %302 = vmin.xlane.f32.xlu0 %v301
    %v303 = vpop.xlane.xlu0 %302
    %vm304 = vcmp.eq.f32.partialorder %v301, %v303
    %v305 = vsel %vm304, %v300, inf
    %306 = vmin.xlane.f32.xlu0 %v305
    %v307 = vpop.xlane.xlu0 %306
    %v308 = vcvt.f32.s32 %v307
    %v309 = vcvt.f32.s32 %v303
    %v310 = vshll.u32 %v309, 16
    %v311 = vadd.s32 %v310, %v308
    %v312 = vand.u32 %v270, 65535
    %v313 = vshra.s32 %v270, 16
    %v314 = vcvt.s32.f32 %v312
    %v315 = vcvt.s32.f32 %v313
    %316 = vmin.xlane.f32.xlu0 %v315
    %v317 = vpop.xlane.xlu0 %316
    %vm318 = vcmp.eq.f32.partialorder %v315, %v317
    %v319 = vsel %vm318, %v314, inf
    %320 = vmin.xlane.f32.xlu0 %v319
    %v321 = vpop.xlane.xlu0 %320
    %v322 = vcvt.f32.s32 %v321
    %v323 = vcvt.f32.s32 %v317
    %v324 = vshll.u32 %v323, 16
    %v325 = vadd.s32 %v324, %v322
    %v326 = vand.u32 %v271, 65535
    %v327 = vshra.s32 %v271, 16
    %v328 = vcvt.s32.f32 %v326
    %v329 = vcvt.s32.f32 %v327
    %330 = vmin.xlane.f32.xlu0 %v329
    %v331 = vpop.xlane.xlu0 %330
    %vm332 = vcmp.eq.f32.partialorder %v329, %v331
    %v333 = vsel %vm332, %v328, inf
    %334 = vmin.xlane.f32.xlu0 %v333
    %v335 = vpop.xlane.xlu0 %334
    %v336 = vcvt.f32.s32 %v335
    %v337 = vcvt.f32.s32 %v331
    %v338 = vshll.u32 %v337, 16
    %v339 = vadd.s32 %v338, %v336
    %v340 = vand.u32 %v272, 65535
    %v341 = vshra.s32 %v272, 16
    %v342 = vcvt.s32.f32 %v340
    %v343 = vcvt.s32.f32 %v341
    %344 = vmin.xlane.f32.xlu0 %v343
    %v345 = vpop.xlane.xlu0 %344
    %vm346 = vcmp.eq.f32.partialorder %v343, %v345
    %v347 = vsel %vm346, %v342, inf
    %348 = vmin.xlane.f32.xlu0 %v347
    %v349 = vpop.xlane.xlu0 %348
    %v350 = vcvt.f32.s32 %v349
    %v351 = vcvt.f32.s32 %v345
    %v352 = vshll.u32 %v351, 16
    %v353 = vadd.s32 %v352, %v350
    %v354 = vand.u32 %v273, 65535
    %v355 = vshra.s32 %v273, 16
    %v356 = vcvt.s32.f32 %v354
    %v357 = vcvt.s32.f32 %v355
    %358 = vmin.xlane.f32.xlu0 %v357
    %v359 = vpop.xlane.xlu0 %358
    %vm360 = vcmp.eq.f32.partialorder %v357, %v359
    %v361 = vsel %vm360, %v356, inf
    %362 = vmin.xlane.f32.xlu0 %v361
    %v363 = vpop.xlane.xlu0 %362
    %v364 = vcvt.f32.s32 %v363
    %v365 = vcvt.f32.s32 %v359
    %v366 = vshll.u32 %v365, 16
    %v367 = vadd.s32 %v366, %v364
    %v368 = vand.u32 %v274, 65535
    %v369 = vshra.s32 %v274, 16
    %v370 = vcvt.s32.f32 %v368
    %v371 = vcvt.s32.f32 %v369
    %372 = vmin.xlane.f32.xlu0 %v371
    %v373 = vpop.xlane.xlu0 %372
    %vm374 = vcmp.eq.f32.partialorder %v371, %v373
    %v375 = vsel %vm374, %v370, inf
    %376 = vmin.xlane.f32.xlu0 %v375
    %v377 = vpop.xlane.xlu0 %376
    %v378 = vcvt.f32.s32 %v377
    %v379 = vcvt.f32.s32 %v373
    %v380 = vshll.u32 %v379, 16
    %v381 = vadd.s32 %v380, %v378
    %v382 = vand.u32 %v275, 65535
    %v383 = vshra.s32 %v275, 16
    %v384 = vcvt.s32.f32 %v382
    %v385 = vcvt.s32.f32 %v383
    %386 = vmin.xlane.f32.xlu0 %v385
    %v387 = vpop.xlane.xlu0 %386
    %vm388 = vcmp.eq.f32.partialorder %v385, %v387
    %v389 = vsel %vm388, %v384, inf
    %390 = vmin.xlane.f32.xlu0 %v389
    %v391 = vpop.xlane.xlu0 %390
    %v392 = vcvt.f32.s32 %v391
    %v393 = vcvt.f32.s32 %v387
    %v394 = vshll.u32 %v393, 16
    %v395 = vadd.s32 %v394, %v392
    %v396 = vand.u32 %v276, 65535
    %v397 = vshra.s32 %v276, 16
    %v398 = vcvt.s32.f32 %v396
    %v399 = vcvt.s32.f32 %v397
    %400 = vmin.xlane.f32.xlu0 %v399
    %v401 = vpop.xlane.xlu0 %400
    %vm402 = vcmp.eq.f32.partialorder %v399, %v401
    %v403 = vsel %vm402, %v398, inf
    %404 = vmin.xlane.f32.xlu0 %v403
    %v405 = vpop.xlane.xlu0 %404
    %v406 = vcvt.f32.s32 %v405
    %v407 = vcvt.f32.s32 %v401
    %v408 = vshll.u32 %v407, 16
    %v409 = vadd.s32 %v408, %v406
    %v410 = vand.u32 %v277, 65535
    %v411 = vshra.s32 %v277, 16
    %v412 = vcvt.s32.f32 %v410
    %v413 = vcvt.s32.f32 %v411
    %414 = vmin.xlane.f32.xlu0 %v413
    %v415 = vpop.xlane.xlu0 %414
    %vm416 = vcmp.eq.f32.partialorder %v413, %v415
    %v417 = vsel %vm416, %v412, inf
    %418 = vmin.xlane.f32.xlu0 %v417
    %v419 = vpop.xlane.xlu0 %418
    %v420 = vcvt.f32.s32 %v419
    %v421 = vcvt.f32.s32 %v415
    %v422 = vshll.u32 %v421, 16
    %v423 = vadd.s32 %v422, %v420
    %v424 = vand.u32 %v278, 65535
    %v425 = vshra.s32 %v278, 16
    %v426 = vcvt.s32.f32 %v424
    %v427 = vcvt.s32.f32 %v425
    %428 = vmin.xlane.f32.xlu0 %v427
    %v429 = vpop.xlane.xlu0 %428
    %vm430 = vcmp.eq.f32.partialorder %v427, %v429
    %v431 = vsel %vm430, %v426, inf
    %432 = vmin.xlane.f32.xlu0 %v431
    %v433 = vpop.xlane.xlu0 %432
    %v434 = vcvt.f32.s32 %v433
    %v435 = vcvt.f32.s32 %v429
    %v436 = vshll.u32 %v435, 16
    %v437 = vadd.s32 %v436, %v434
    %v438 = vand.u32 %v279, 65535
    %v439 = vshra.s32 %v279, 16
    %v440 = vcvt.s32.f32 %v438
    %v441 = vcvt.s32.f32 %v439
    %442 = vmin.xlane.f32.xlu0 %v441
    %v443 = vpop.xlane.xlu0 %442
    %vm444 = vcmp.eq.f32.partialorder %v441, %v443
    %v445 = vsel %vm444, %v440, inf
    %446 = vmin.xlane.f32.xlu0 %v445
    %v447 = vpop.xlane.xlu0 %446
    %v448 = vcvt.f32.s32 %v447
    %v449 = vcvt.f32.s32 %v443
    %v450 = vshll.u32 %v449, 16
    %v451 = vadd.s32 %v450, %v448
    %v452 = vand.u32 %v280, 65535
    %v453 = vshra.s32 %v280, 16
    %v454 = vcvt.s32.f32 %v452
    %v455 = vcvt.s32.f32 %v453
    %456 = vmin.xlane.f32.xlu0 %v455
    %v457 = vpop.xlane.xlu0 %456
    %vm458 = vcmp.eq.f32.partialorder %v455, %v457
    %v459 = vsel %vm458, %v454, inf
    %460 = vmin.xlane.f32.xlu0 %v459
    %v461 = vpop.xlane.xlu0 %460
    %v462 = vcvt.f32.s32 %v461
    %v463 = vcvt.f32.s32 %v457
    %v464 = vshll.u32 %v463, 16
    %v465 = vadd.s32 %v464, %v462
    %v466 = vand.u32 %v281, 65535
    %v467 = vshra.s32 %v281, 16
    %v468 = vcvt.s32.f32 %v466
    %v469 = vcvt.s32.f32 %v467
    %470 = vmin.xlane.f32.xlu0 %v469
    %v471 = vpop.xlane.xlu0 %470
    %vm472 = vcmp.eq.f32.partialorder %v469, %v471
    %v473 = vsel %vm472, %v468, inf
    %474 = vmin.xlane.f32.xlu0 %v473
    %v475 = vpop.xlane.xlu0 %474
    %v476 = vcvt.f32.s32 %v475
    %v477 = vcvt.f32.s32 %v471
    %v478 = vshll.u32 %v477, 16
    %v479 = vadd.s32 %v478, %v476
    %v480 = vand.u32 %v282, 65535
    %v481 = vshra.s32 %v282, 16
    %v482 = vcvt.s32.f32 %v480
    %v483 = vcvt.s32.f32 %v481
    %484 = vmin.xlane.f32.xlu0 %v483
    %v485 = vpop.xlane.xlu0 %484
    %vm486 = vcmp.eq.f32.partialorder %v483, %v485
    %v487 = vsel %vm486, %v482, inf
    %488 = vmin.xlane.f32.xlu0 %v487
    %v489 = vpop.xlane.xlu0 %488
    %v490 = vcvt.f32.s32 %v489
    %v491 = vcvt.f32.s32 %v485
    %v492 = vshll.u32 %v491, 16
    %v493 = vadd.s32 %v492, %v490
    %v494 = vand.u32 %v283, 65535
    %v495 = vshra.s32 %v283, 16
    %v496 = vcvt.s32.f32 %v494
    %v497 = vcvt.s32.f32 %v495
    %498 = vmin.xlane.f32.xlu0 %v497
    %v499 = vpop.xlane.xlu0 %498
    %vm500 = vcmp.eq.f32.partialorder %v497, %v499
    %v501 = vsel %vm500, %v496, inf
    %502 = vmin.xlane.f32.xlu0 %v501
    %v503 = vpop.xlane.xlu0 %502
    %v504 = vcvt.f32.s32 %v503
    %v505 = vcvt.f32.s32 %v499
    %v506 = vshll.u32 %v505, 16
    %v507 = vadd.s32 %v506, %v504
    %508 = vxpose.xlu0.b32.start [1/16] %v297, 128
    %509 = vxpose.xlu0.b32.cont [2/16] %v311, 128
    %510 = vxpose.xlu0.b32.cont [3/16] %v325, 128
    %511 = vxpose.xlu0.b32.cont [4/16] %v339, 128
    %512 = vxpose.xlu0.b32.cont [5/16] %v353, 128
    %513 = vxpose.xlu0.b32.cont [6/16] %v367, 128
    %514 = vxpose.xlu0.b32.cont [7/16] %v381, 128
    %515 = vxpose.xlu0.b32.cont [8/16] %v395, 128
    %516 = vxpose.xlu0.b32.cont [9/16] %v409, 128
    %517 = vxpose.xlu0.b32.cont [10/16] %v423, 128
    %518 = vxpose.xlu0.b32.cont [11/16] %v437, 128
    %519 = vxpose.xlu0.b32.cont [12/16] %v451, 128
    %520 = vxpose.xlu0.b32.cont [13/16] %v465, 128
    %521 = vxpose.xlu0.b32.cont [14/16] %v479, 128
    %522 = vxpose.xlu0.b32.cont [15/16] %v493, 128
    %523 = vxpose.xlu0.b32.end [16/16] %v507, 128
    %v524 = vpop.trf.xlu0
    %v525 = vpop.trf.xlu0
    %v526 = vpop.trf.xlu0
    %v527 = vpop.trf.xlu0
    %v528 = vpop.trf.xlu0
    %v529 = vpop.trf.xlu0
    %v530 = vpop.trf.xlu0
    %v531 = vpop.trf.xlu0
    %v532 = vpop.trf.xlu0
    %v533 = vpop.trf.xlu0
    %v534 = vpop.trf.xlu0
    %v535 = vpop.trf.xlu0
    %v536 = vpop.trf.xlu0
    %v537 = vpop.trf.xlu0
    %v538 = vpop.trf.xlu0
    %v539 = vpop.trf.xlu0
    %540 = vst [vmem:[%s4] sm:$0x1] %v524
    %vm541 = vcmp.eq.s32.totalorder %v219, %v297
    %vm542 = vcmp.eq.s32.totalorder %v219, %v311
    %vm543 = vcmp.eq.s32.totalorder %v219, %v325
    %vm544 = vcmp.eq.s32.totalorder %v219, %v339
    %vm545 = vcmp.eq.s32.totalorder %v219, %v353
    %vm546 = vcmp.eq.s32.totalorder %v219, %v367
    %vm547 = vcmp.eq.s32.totalorder %v219, %v381
    %vm548 = vcmp.eq.s32.totalorder %v219, %v395
    %vm549 = vcmp.eq.s32.totalorder %v219, %v409
    %vm550 = vcmp.eq.s32.totalorder %v219, %v423
    %vm551 = vcmp.eq.s32.totalorder %v219, %v437
    %vm552 = vcmp.eq.s32.totalorder %v219, %v451
    %vm553 = vcmp.eq.s32.totalorder %v219, %v465
    %vm554 = vcmp.eq.s32.totalorder %v219, %v479
    %vm555 = vcmp.eq.s32.totalorder %v219, %v493
    %vm556 = vcmp.eq.s32.totalorder %v219, %v507
    %v557 = vsel %vm541, 1, 0
    %v558 = vsel %vm542, 1, 0
    %v559 = vsel %vm543, 1, 0
    %v560 = vsel %vm544, 1, 0
    %v561 = vsel %vm545, 1, 0
    %v562 = vsel %vm546, 1, 0
    %v563 = vsel %vm547, 1, 0
    %v564 = vsel %vm548, 1, 0
    %v565 = vsel %vm549, 1, 0
    %v566 = vsel %vm550, 1, 0
    %v567 = vsel %vm551, 1, 0
    %v568 = vsel %vm552, 1, 0
    %v569 = vsel %vm553, 1, 0
    %v570 = vsel %vm554, 1, 0
    %v571 = vsel %vm555, 1, 0
    %v572 = vsel %vm556, 1, 0
    %v573 = vcvt.s32.f32 %v557
    %v574 = vcvt.s32.f32 %v558
    %v575 = vcvt.s32.f32 %v559
    %v576 = vcvt.s32.f32 %v560
    %v577 = vcvt.s32.f32 %v561
    %v578 = vcvt.s32.f32 %v562
    %v579 = vcvt.s32.f32 %v563
    %v580 = vcvt.s32.f32 %v564
    %v581 = vcvt.s32.f32 %v565
    %v582 = vcvt.s32.f32 %v566
    %v583 = vcvt.s32.f32 %v567
    %v584 = vcvt.s32.f32 %v568
    %v585 = vcvt.s32.f32 %v569
    %v586 = vcvt.s32.f32 %v570
    %v587 = vcvt.s32.f32 %v571
    %v588 = vcvt.s32.f32 %v572
    %589 = vmatprep.subr.mxu0 0.0
    %590 = vmatpush1.msra.mxu0 %v34
    %591 = vmatprep.subr.mxu0 0.0
    %592 = vmatpush1.msra.mxu0 %v35
    %593 = vmatprep.subr.mxu0 0.0
    %594 = vmatpush1.msra.mxu0 %v36
    %595 = vmatprep.subr.mxu0 0.0
    %596 = vmatpush1.msra.mxu0 %v37
    %597 = vmatprep.subr.mxu0 0.0
    %598 = vmatpush1.msra.mxu0 %v38
    %599 = vmatprep.subr.mxu0 0.0
    %600 = vmatpush1.msra.mxu0 %v39
    %601 = vmatprep.subr.mxu0 0.0
    %602 = vmatpush1.msra.mxu0 %v40
    %603 = vmatprep.subr.mxu0 0.0
    %604 = vmatpush1.msra.mxu0 %v41
    %605 = vmatprep.subr.mxu0 0.0
    %606 = vmatpush1.msra.mxu0 %v42
    %607 = vmatprep.subr.mxu0 0.0
    %608 = vmatpush1.msra.mxu0 %v43
    %609 = vmatprep.subr.mxu0 0.0
    %610 = vmatpush1.msra.mxu0 %v44
    %611 = vmatprep.subr.mxu0 0.0
    %612 = vmatpush1.msra.mxu0 %v45
    %613 = vmatprep.subr.mxu0 0.0
    %614 = vmatpush1.msra.mxu0 %v46
    %615 = vmatprep.subr.mxu0 0.0
    %616 = vmatpush1.msra.mxu0 %v47
    %617 = vmatprep.subr.mxu0 0.0
    %618 = vmatpush1.msra.mxu0 %v48
    %619 = vmatprep.subr.mxu0 0.0
    %620 = vmatpush1.msra.mxu0 %v49
    %621 = vmatprep.subr.mxu0 0.0
    %622 = vmatpush1.msra.mxu0 0.0
    %623 = vmatprep.subr.mxu0 0.0
    %624 = vmatpush1.msra.mxu0 0.0
    %625 = vmatprep.subr.mxu0 0.0
    %626 = vmatpush1.msra.mxu0 0.0
    %627 = vmatprep.subr.mxu0 0.0
    %628 = vmatpush1.msra.mxu0 0.0
    %629 = vmatprep.subr.mxu0 0.0
    %630 = vmatpush1.msra.mxu0 0.0
    %631 = vmatprep.subr.mxu0 0.0
    %632 = vmatpush1.msra.mxu0 0.0
    %633 = vmatprep.subr.mxu0 0.0
    %634 = vmatpush1.msra.mxu0 0.0
    %635 = vmatprep.subr.mxu0 0.0
    %636 = vmatpush1.msra.mxu0 0.0
    %637 = vmatprep.subr.mxu0 0.0
    %638 = vmatpush1.msra.mxu0 0.0
    %639 = vmatprep.subr.mxu0 0.0
    %640 = vmatpush1.msra.mxu0 0.0
    %641 = vmatprep.subr.mxu0 0.0
    %642 = vmatpush1.msra.mxu0 0.0
    %643 = vmatprep.subr.mxu0 0.0
    %644 = vmatpush1.msra.mxu0 0.0
    %645 = vmatprep.subr.mxu0 0.0
    %646 = vmatpush1.msra.mxu0 0.0
    %647 = vmatprep.subr.mxu0 0.0
    %648 = vmatpush1.msra.mxu0 0.0
    %649 = vmatprep.subr.mxu0 0.0
    %650 = vmatpush1.msra.mxu0 0.0
    %651 = vmatprep.subr.mxu0 0.0
    %652 = vmatpush1.msra.mxu0 0.0
    %653 = vmatprep.mubr.f32.mxu0 0.0
    %654 = vmatmul.mubr.f32.gmra.mrb[0].mxu0 %v573
    %v655 = vpop.f32.mrb[0].mxu0
    %v656 = vadd.f32 0.0, %v655
    %v657 = vpop.f32.mrb[0].mxu0
    %658 = vmatprep.mubr.f32.mxu0 0.0
    %659 = vmatmul.mubr.f32.gmra.mrb[0].mxu0 %v574
    %v660 = vpop.f32.mrb[0].mxu0
    %v661 = vadd.f32 0.0, %v660
    %v662 = vpop.f32.mrb[0].mxu0
    %663 = vmatprep.mubr.f32.mxu0 0.0
    %664 = vmatmul.mubr.f32.gmra.mrb[0].mxu0 %v575
    %v665 = vpop.f32.mrb[0].mxu0
    %v666 = vadd.f32 0.0, %v665
    %v667 = vpop.f32.mrb[0].mxu0
    %668 = vmatprep.mubr.f32.mxu0 0.0
    %669 = vmatmul.mubr.f32.gmra.mrb[0].mxu0 %v576
    %v670 = vpop.f32.mrb[0].mxu0
    %v671 = vadd.f32 0.0, %v670
    %v672 = vpop.f32.mrb[0].mxu0
    %673 = vmatprep.mubr.f32.mxu0 0.0
    %674 = vmatmul.mubr.f32.gmra.mrb[0].mxu0 %v577
    %v675 = vpop.f32.mrb[0].mxu0
    %v676 = vadd.f32 0.0, %v675
    %v677 = vpop.f32.mrb[0].mxu0
    %678 = vmatprep.mubr.f32.mxu0 0.0
    %679 = vmatmul.mubr.f32.gmra.mrb[0].mxu0 %v578
    %v680 = vpop.f32.mrb[0].mxu0
    %v681 = vadd.f32 0.0, %v680
    %v682 = vpop.f32.mrb[0].mxu0
    %683 = vmatprep.mubr.f32.mxu0 0.0
    %684 = vmatmul.mubr.f32.gmra.mrb[0].mxu0 %v579
    %v685 = vpop.f32.mrb[0].mxu0
    %v686 = vadd.f32 0.0, %v685
    %v687 = vpop.f32.mrb[0].mxu0
    %688 = vmatprep.mubr.f32.mxu0 0.0
    %689 = vmatmul.mubr.f32.gmra.mrb[0].mxu0 %v580
    %v690 = vpop.f32.mrb[0].mxu0
    %v691 = vadd.f32 0.0, %v690
    %v692 = vpop.f32.mrb[0].mxu0
    %693 = vmatprep.mubr.f32.mxu0 0.0
    %694 = vmatmul.mubr.f32.gmra.mrb[0].mxu0 %v581
    %v695 = vpop.f32.mrb[0].mxu0
    %v696 = vadd.f32 0.0, %v695
    %v697 = vpop.f32.mrb[0].mxu0
    %698 = vmatprep.mubr.f32.mxu0 0.0
    %699 = vmatmul.mubr.f32.gmra.mrb[0].mxu0 %v582
    %v700 = vpop.f32.mrb[0].mxu0
    %v701 = vadd.f32 0.0, %v700
    %v702 = vpop.f32.mrb[0].mxu0
    %703 = vmatprep.mubr.f32.mxu0 0.0
    %704 = vmatmul.mubr.f32.gmra.mrb[0].mxu0 %v583
    %v705 = vpop.f32.mrb[0].mxu0
    %v706 = vadd.f32 0.0, %v705
    %v707 = vpop.f32.mrb[0].mxu0
    %708 = vmatprep.mubr.f32.mxu0 0.0
    %709 = vmatmul.mubr.f32.gmra.mrb[0].mxu0 %v584
    %v710 = vpop.f32.mrb[0].mxu0
    %v711 = vadd.f32 0.0, %v710
    %v712 = vpop.f32.mrb[0].mxu0
    %713 = vmatprep.mubr.f32.mxu0 0.0
    %714 = vmatmul.mubr.f32.gmra.mrb[0].mxu0 %v585
    %v715 = vpop.f32.mrb[0].mxu0
    %v716 = vadd.f32 0.0, %v715
    %v717 = vpop.f32.mrb[0].mxu0
    %718 = vmatprep.mubr.f32.mxu0 0.0
    %719 = vmatmul.mubr.f32.gmra.mrb[0].mxu0 %v586
    %v720 = vpop.f32.mrb[0].mxu0
    %v721 = vadd.f32 0.0, %v720
    %v722 = vpop.f32.mrb[0].mxu0
    %723 = vmatprep.mubr.f32.mxu0 0.0
    %724 = vmatmul.mubr.f32.gmra.mrb[0].mxu0 %v587
    %v725 = vpop.f32.mrb[0].mxu0
    %v726 = vadd.f32 0.0, %v725
    %v727 = vpop.f32.mrb[0].mxu0
    %728 = vmatprep.mubr.f32.mxu0 0.0
    %729 = vmatmul.mubr.f32.gmra.mrb[0].mxu0 %v588
    %v730 = vpop.f32.mrb[0].mxu0
    %v731 = vadd.f32 0.0, %v730
    %v732 = vpop.f32.mrb[0].mxu0
    %733 = vdwg.mxu0
    %734 = vst [vmem:[%s3] sm:$0xff] %v656
    %735 = vst [vmem:[%s3 + $0x8] sm:$0xff] %v661
    %736 = vst [vmem:[%s3 + $0x10] sm:$0xff] %v666
    %737 = vst [vmem:[%s3 + $0x18] sm:$0xff] %v671
    %738 = vst [vmem:[%s3 + $0x20] sm:$0xff] %v676
    %739 = vst [vmem:[%s3 + $0x28] sm:$0xff] %v681
    %740 = vst [vmem:[%s3 + $0x30] sm:$0xff] %v686
    %741 = vst [vmem:[%s3 + $0x38] sm:$0xff] %v691
    %742 = vst [vmem:[%s3 + $0x40] sm:$0xff] %v696
    %743 = vst [vmem:[%s3 + $0x48] sm:$0xff] %v701
    %744 = vst [vmem:[%s3 + $0x50] sm:$0xff] %v706
    %745 = vst [vmem:[%s3 + $0x58] sm:$0xff] %v711
    %746 = vst [vmem:[%s3 + $0x60] sm:$0xff] %v716
    %747 = vst [vmem:[%s3 + $0x68] sm:$0xff] %v721
    %748 = vst [vmem:[%s3 + $0x70] sm:$0xff] %v726
    %749 = vst [vmem:[%s3 + $0x78] sm:$0xff] %v731
    %s750 = smul.u32 0, 128
    %v751 = vlaneseq
    %v752 = vshrl.u32 %v751, 7
    %v753 = vadd.s32 %v752, 8
    %v754 = vadd.s32 %v752, 16
    %v755 = vadd.s32 %v752, 24
    %v756 = vadd.s32 %v752, 32
    %v757 = vadd.s32 %v752, 40
    %v758 = vadd.s32 %v752, 48
    %v759 = vadd.s32 %v752, 56
    %v760 = vadd.s32 %v752, 64
    %v761 = vadd.s32 %v752, 72
    %v762 = vadd.s32 %v752, 80
    %v763 = vadd.s32 %v752, 88
    %v764 = vadd.s32 %v752, 96
    %v765 = vadd.s32 %v752, 104
    %v766 = vadd.s32 %v752, 112
    %v767 = vadd.s32 %v752, 120
    %v768 = vstv %s750
    %v769 = vadd.s32 %v768, %v752
    %v770 = vadd.s32 %v768, %v753
    %v771 = vadd.s32 %v768, %v754
    %v772 = vadd.s32 %v768, %v755
    %v773 = vadd.s32 %v768, %v756
    %v774 = vadd.s32 %v768, %v757
    %v775 = vadd.s32 %v768, %v758
    %v776 = vadd.s32 %v768, %v759
    %v777 = vadd.s32 %v768, %v760
    %v778 = vadd.s32 %v768, %v761
    %v779 = vadd.s32 %v768, %v762
    %v780 = vadd.s32 %v768, %v763
    %v781 = vadd.s32 %v768, %v764
    %v782 = vadd.s32 %v768, %v765
    %v783 = vadd.s32 %v768, %v766
    %v784 = vadd.s32 %v768, %v767
    %v785 = vsub.f32 %v656, %v18
    %v786 = vsub.f32 %v661, %v19
    %v787 = vsub.f32 %v666, %v20
    %v788 = vsub.f32 %v671, %v21
    %v789 = vsub.f32 %v676, %v22
    %v790 = vsub.f32 %v681, %v23
    %v791 = vsub.f32 %v686, %v24
    %v792 = vsub.f32 %v691, %v25
    %v793 = vsub.f32 %v696, %v26
    %v794 = vsub.f32 %v701, %v27
    %v795 = vsub.f32 %v706, %v28
    %v796 = vsub.f32 %v711, %v29
    %v797 = vsub.f32 %v716, %v30
    %v798 = vsub.f32 %v721, %v31
    %v799 = vsub.f32 %v726, %v32
    %v800 = vsub.f32 %v731, %v33
    %v801 = vmul.f32 %v785, %v785
    %v802 = vmul.f32 %v786, %v786
    %v803 = vmul.f32 %v787, %v787
    %v804 = vmul.f32 %v788, %v788
    %v805 = vmul.f32 %v789, %v789
    %v806 = vmul.f32 %v790, %v790
    %v807 = vmul.f32 %v791, %v791
    %v808 = vmul.f32 %v792, %v792
    %v809 = vmul.f32 %v793, %v793
    %v810 = vmul.f32 %v794, %v794
    %v811 = vmul.f32 %v795, %v795
    %v812 = vmul.f32 %v796, %v796
    %v813 = vmul.f32 %v797, %v797
    %v814 = vmul.f32 %v798, %v798
    %v815 = vmul.f32 %v799, %v799
    %v816 = vmul.f32 %v800, %v800
    %817 = vadd.xlane.f32.xlu0 %v801
    %v818 = vpop.xlane.xlu0 %817
    %819 = vadd.xlane.f32.xlu0 %v802
    %v820 = vpop.xlane.xlu0 %819
    %821 = vadd.xlane.f32.xlu0 %v803
    %v822 = vpop.xlane.xlu0 %821
    %823 = vadd.xlane.f32.xlu0 %v804
    %v824 = vpop.xlane.xlu0 %823
    %825 = vadd.xlane.f32.xlu0 %v805
    %v826 = vpop.xlane.xlu0 %825
    %827 = vadd.xlane.f32.xlu0 %v806
    %v828 = vpop.xlane.xlu0 %827
    %829 = vadd.xlane.f32.xlu0 %v807
    %v830 = vpop.xlane.xlu0 %829
    %831 = vadd.xlane.f32.xlu0 %v808
    %v832 = vpop.xlane.xlu0 %831
    %833 = vadd.xlane.f32.xlu0 %v809
    %v834 = vpop.xlane.xlu0 %833
    %835 = vadd.xlane.f32.xlu0 %v810
    %v836 = vpop.xlane.xlu0 %835
    %837 = vadd.xlane.f32.xlu0 %v811
    %v838 = vpop.xlane.xlu0 %837
    %839 = vadd.xlane.f32.xlu0 %v812
    %v840 = vpop.xlane.xlu0 %839
    %841 = vadd.xlane.f32.xlu0 %v813
    %v842 = vpop.xlane.xlu0 %841
    %843 = vadd.xlane.f32.xlu0 %v814
    %v844 = vpop.xlane.xlu0 %843
    %845 = vadd.xlane.f32.xlu0 %v815
    %v846 = vpop.xlane.xlu0 %845
    %847 = vadd.xlane.f32.xlu0 %v816
    %v848 = vpop.xlane.xlu0 %847
    %vm849 = vcmp.lt.s32.totalorder %v769, 128
    %vm850 = vcmp.lt.s32.totalorder %v770, 128
    %vm851 = vcmp.lt.s32.totalorder %v771, 128
    %vm852 = vcmp.lt.s32.totalorder %v772, 128
    %vm853 = vcmp.lt.s32.totalorder %v773, 128
    %vm854 = vcmp.lt.s32.totalorder %v774, 128
    %vm855 = vcmp.lt.s32.totalorder %v775, 128
    %vm856 = vcmp.lt.s32.totalorder %v776, 128
    %vm857 = vcmp.lt.s32.totalorder %v777, 128
    %vm858 = vcmp.lt.s32.totalorder %v778, 128
    %vm859 = vcmp.lt.s32.totalorder %v779, 128
    %vm860 = vcmp.lt.s32.totalorder %v780, 128
    %vm861 = vcmp.lt.s32.totalorder %v781, 128
    %vm862 = vcmp.lt.s32.totalorder %v782, 128
    %vm863 = vcmp.lt.s32.totalorder %v783, 128
    %vm864 = vcmp.lt.s32.totalorder %v784, 128
    %v865 = vsel %vm849, %v818, 0.0
    %v866 = vsel %vm850, %v820, 0.0
    %v867 = vsel %vm851, %v822, 0.0
    %v868 = vsel %vm852, %v824, 0.0
    %v869 = vsel %vm853, %v826, 0.0
    %v870 = vsel %vm854, %v828, 0.0
    %v871 = vsel %vm855, %v830, 0.0
    %v872 = vsel %vm856, %v832, 0.0
    %v873 = vsel %vm857, %v834, 0.0
    %v874 = vsel %vm858, %v836, 0.0
    %v875 = vsel %vm859, %v838, 0.0
    %v876 = vsel %vm860, %v840, 0.0
    %v877 = vsel %vm861, %v842, 0.0
    %v878 = vsel %vm862, %v844, 0.0
    %v879 = vsel %vm863, %v846, 0.0
    %v880 = vsel %vm864, %v848, 0.0
    %v881 = vadd.f32 %v865, %v866
    %v882 = vadd.f32 %v881, %v867
    %v883 = vadd.f32 %v882, %v868
    %v884 = vadd.f32 %v883, %v869
    %v885 = vadd.f32 %v884, %v870
    %v886 = vadd.f32 %v885, %v871
    %v887 = vadd.f32 %v886, %v872
    %v888 = vadd.f32 %v887, %v873
    %v889 = vadd.f32 %v888, %v874
    %v890 = vadd.f32 %v889, %v875
    %v891 = vadd.f32 %v890, %v876
    %v892 = vadd.f32 %v891, %v877
    %v893 = vadd.f32 %v892, %v878
    %v894 = vadd.f32 %v893, %v879
    %v895 = vadd.f32 %v894, %v880
    %v896 = vrot.slane %v895, 4
    %v897 = vadd.f32 %v895, %v896
    %v898 = vrot.slane %v897, 2
    %v899 = vadd.f32 %v897, %v898
    %v900 = vrot.slane %v899, 1
    %v901 = vadd.f32 %v899, %v900
    %vm902 = vcmask 0
    %903 = vst.msk [vmem:[#allocation2] sm:$0x1] %vm902, %v901
    // Predicated region
    $region14: #{quantize_forward.1} parent=1 // pred_check
      _
    $region15: #{quantize_forward.1} parent=1 // pred_check_branch
      %905 = sbr.rel (0) target = $region17
    $region16: #{quantize_forward.1} parent=1 // pred_region
      _
    $region17: #{quantize_forward.1} parent=1 // pred_fallthru
      _
    // Predicated region
    $region18: #{quantize_forward.1} parent=1 // pred_check
      _
    $region19: #{quantize_forward.1} parent=1 // pred_check_branch
      %907 = sbr.rel (0) target = $region21
    $region20: #{quantize_forward.1} parent=1 // pred_region
      _
    $region21: #{quantize_forward.1} parent=1 // pred_fallthru
      _
    // Predicated region
    $region22: #{quantize_forward.1} parent=1 // pred_check
      _
    $region23: #{quantize_forward.1} parent=1 // pred_check_branch
      %909 = sbr.rel (0) target = $region25
    $region24: #{quantize_forward.1} parent=1 // pred_region
      %s911 = ssub.s32 16, 16
      %912 = vsyncadd [#allocation3], %s911
      %s914 = sshll.u32 [#allocation2], 4
      %s915 = int_to_ptr.vmem [resolvable:$true] %s914
      %917 = dma.vmem_to_hbm [thread:$0]  %s915, 16, %s5, [#allocation3]
    $region25: #{quantize_forward.1} parent=1 // pred_fallthru
      _
    // Predicated region
    $region26: #{quantize_forward.1} parent=1 // pred_check
      _
    $region27: #{quantize_forward.1} parent=1 // pred_check_branch
      %919 = sbr.rel (0) target = $region29
    $region28: #{quantize_forward.1} parent=1 // pred_region
      _
    $region29: #{quantize_forward.1} parent=1 // pred_fallthru
      _
    // Predicated region
    $region30: #{quantize_forward.1} parent=1 // pred_check
      _
    $region31: #{quantize_forward.1} parent=1 // pred_check_branch
      %921 = sbr.rel (0) target = $region33
    $region32: #{quantize_forward.1} parent=1 // pred_region
      _
    $region33: #{quantize_forward.1} parent=1 // pred_fallthru
      _
    // Predicated region
    $region34: #{quantize_forward.1} parent=1 // pred_check
      _
    $region35: #{quantize_forward.1} parent=1 // pred_check_branch
      %923 = sbr.rel (0) target = $region37
    $region36: #{quantize_forward.1} parent=1 // pred_region
      %924 = dma.done [#allocation3], 16
    $region37: #{quantize_forward.1} parent=1 // pred_fallthru
      _
    %925 = vsyncpa [#allocation3], 1

</llo_original>
